<compile_context>
chip_gen: v5e
topology: v5e:2x2
jax: 0.10.0
libtpu: 0.0.40
codegen_flags: <defaults>
</compile_context>

<pallas_src>
import functools

import jax
import jax.numpy as jnp
from jax.experimental import pallas as pl
from jax.experimental.pallas import tpu as pltpu

HID1, HID2, HID3 = 256, 128, 64
HID3_PAD = 128          # lane-dense padded fc3 width
TM_DEFAULT = 512        # batch tile (multiple of 16)


def actor_kernel(s_ref, w1_ref, w2_ref, w3_ref, w4_ref, b_ref, out_ref):
    """One batch tile of the fused 4-layer MLP (bf16 MXU operands, f32 math)."""
    x = s_ref[...].astype(jnp.bfloat16)

    # fc1 + relu
    h = jnp.dot(x, w1_ref[...], preferred_element_type=jnp.float32)
    h = jnp.maximum(h + b_ref[0:1, :HID1], 0.0)

    # fc2 + relu
    h = jnp.dot(h.astype(jnp.bfloat16), w2_ref[...],
                preferred_element_type=jnp.float32)
    h = jnp.maximum(h + b_ref[1:2, :HID2], 0.0)

    # fc3 + relu (output padded to 128 lanes; padded bias lanes are zero so the
    # padded columns stay exactly zero after relu)
    h = jnp.dot(h.astype(jnp.bfloat16), w3_ref[...],
                preferred_element_type=jnp.float32)
    h = jnp.maximum(h + b_ref[2:3, :HID3_PAD], 0.0)

    # fc4 (padded input rows of W4 are zero) + sigmoid, narrow output store
    act_dim = out_ref.shape[-1]
    h = jnp.dot(h.astype(jnp.bfloat16), w4_ref[...],
                preferred_element_type=jnp.float32)
    h = h + b_ref[3:4, :act_dim]
    out_ref[...] = jax.nn.sigmoid(h).astype(out_ref.dtype)


def prepack_actor_params(params):
    """One-time packing of raw f32 params into kernel-ready buffers."""
    w1, b1, w2, b2, w3, b3, w4, b4 = params
    action_dim = w4.shape[1]
    assert action_dim <= 128, "kernel assumes action_dim <= 128"

    w1b = w1.astype(jnp.bfloat16)
    w2b = w2.astype(jnp.bfloat16)
    # Pad fc3 output columns (and b3) to 128 lanes with zeros; pad the matching
    # fc4 input rows with zeros -> numerics unchanged, lane-dense intermediates.
    w3p = jnp.zeros((HID2, HID3_PAD), jnp.float32)
    w3p = w3p.at[:, :HID3].set(w3).astype(jnp.bfloat16)
    w4p = jnp.zeros((HID3_PAD, action_dim), jnp.float32)
    w4p = w4p.at[:HID3, :].set(w4).astype(jnp.bfloat16)

    # Pack all biases into a single (4, 256) f32 buffer (single VMEM-resident
    # operand; unused lanes are zero).
    b_packed = jnp.zeros((4, HID1), jnp.float32)
    b_packed = b_packed.at[0, :HID1].set(b1.reshape(-1))
    b_packed = b_packed.at[1, :HID2].set(b2.reshape(-1))
    b_packed = b_packed.at[2, :HID3].set(b3.reshape(-1))
    b_packed = b_packed.at[3, :action_dim].set(b4.reshape(-1))

    return (w1b, w2b, w3p, w4p, b_packed)


@functools.partial(jax.jit, static_argnames=("tm",))
def actor_forward(state, packed_params, *, tm=TM_DEFAULT):
    """state: [n, state_dim] f32 -> action: [n, action_dim] f32."""
    n, state_dim = state.shape
    w1b, w2b, w3p, w4p, b_packed = packed_params
    action_dim = w4p.shape[1]

    # Batch tile: multiple of 16 (bf16 sublane packing), as large as tm, but
    # capped so moderate/large batches produce >= 2 tiles (both v7x cores work).
    def round16(v):
        return ((v + 15) // 16) * 16

    if n <= 16:
        block_m = 16
    else:
        block_m = max(16, min(tm, round16(pl.cdiv(n, 2))))
    grid_m = pl.cdiv(n, block_m)   # partial tail tile handled by Pallas

    def const(shape):
        return pl.BlockSpec(shape, lambda i: (0,) * len(shape))

    out = pl.pallas_call(
        actor_kernel,
        out_shape=jax.ShapeDtypeStruct((n, action_dim), jnp.float32),
        grid=(grid_m,),
        in_specs=[
            pl.BlockSpec((block_m, state_dim), lambda i: (i, 0)),  # state tile
            const(w1b.shape), const(w2b.shape),
            const(w3p.shape), const(w4p.shape),
            const(b_packed.shape),
        ],
        out_specs=pl.BlockSpec((block_m, action_dim), lambda i: (i, 0)),
        compiler_params=pltpu.CompilerParams(
            dimension_semantics=("parallel",),
            vmem_limit_bytes=32 << 20,
        ),
    )(state, w1b, w2b, w3p, w4p, b_packed)

    return out


def init_actor_params(key, state_dim, action_dim):
    """Deterministic init mirroring the PyTorch module's __init__.

    fc1..fc3 weights: fanin_init -> U(-1/sqrt(fan_in), 1/sqrt(fan_in))
    fc4 weights:      U(0, 1)
    biases:           PyTorch nn.Linear default U(-1/sqrt(fan_in), 1/sqrt(fan_in))
    Weights are stored as [in, out] (transposed vs. PyTorch).
    """
    dims = [state_dim, HID1, HID2, HID3, action_dim]
    keys = jax.random.split(key, 8)
    params = []
    for i in range(4):
        fan_in, fan_out = dims[i], dims[i + 1]
        bound = 1.0 / jnp.sqrt(jnp.float32(fan_in))
        if i < 3:
            w = jax.random.uniform(keys[2 * i], (fan_in, fan_out),
                                   jnp.float32, -bound, bound)
        else:
            w = jax.random.uniform(keys[2 * i], (fan_in, fan_out),
                                   jnp.float32, 0.0, 1.0)
        b = jax.random.uniform(keys[2 * i + 1], (1, fan_out),
                               jnp.float32, -bound, bound)
        params += [w, b]
    return tuple(params)


def actor_reference(state, params):
    """Pure-JAX (f32) reference matching the PyTorch module."""
    w1, b1, w2, b2, w3, b3, w4, b4 = params
    x = jnp.maximum(state @ w1 + b1, 0.0)
    x = jnp.maximum(x @ w2 + b2, 0.0)
    x = jnp.maximum(x @ w3 + b3, 0.0)
    return jax.nn.sigmoid(x @ w4 + b4)


if __name__ == "__main__":
    key = jax.random.PRNGKey(0)
    k_param, k_state, k_big = jax.random.split(key, 3)

    batch = 2
    state_dim = 16
    action_dim = 4
    action_lim = 1.0  # only used for later rescaling in DDPG; not part of forward

    params = init_actor_params(k_param, state_dim, action_dim)
    packed = prepack_actor_params(params)  # one-time packing (hoisted out of forward)
    state = jax.random.normal(k_state, (batch, state_dim), jnp.float32)

    action = jax.block_until_ready(actor_forward(state, packed))
    ref = actor_reference(state, params)
    assert action.shape == (batch, action_dim)
    # bf16 MXU operands with f32 accumulate -> loosened tolerance vs. f32 ref.
    assert jnp.allclose(action, ref, atol=2e-2, rtol=2e-2), "mismatch vs reference"

    # Also exercise the multi-tile batch grid + partial tail-tile path.
    big_batch = 300
    big_state = jax.random.normal(k_big, (big_batch, state_dim), jnp.float32)
    big_action = jax.block_until_ready(actor_forward(big_state, packed))
    big_ref = actor_reference(big_state, params)
    assert big_action.shape == (big_batch, action_dim)
    assert jnp.allclose(big_action, big_ref, atol=2e-2, rtol=2e-2), \
        "mismatch vs reference (batched grid)"

    print("KERNEL_OK")
</pallas_src>

<mosaic_0001>
module attributes {stable_mosaic.version = 11 : i64} {
  func.func @actor_kernel(%arg0: i32, %arg1: memref<16x16xf32, #tpu.memory_space<vmem>>, %arg2: memref<16x256xbf16, #tpu.memory_space<vmem>>, %arg3: memref<256x128xbf16, #tpu.memory_space<vmem>>, %arg4: memref<128x128xbf16, #tpu.memory_space<vmem>>, %arg5: memref<128x4xbf16, #tpu.memory_space<vmem>>, %arg6: memref<4x256xf32, #tpu.memory_space<vmem>>, %arg7: memref<16x4xf32, #tpu.memory_space<vmem>>) attributes {dimension_semantics = [#tpu.dimension_semantics<parallel>], iteration_bounds = array<i64: 1>, scalar_prefetch = 0 : i64, scratch_operands = 0 : i64, tpu.core_type = #tpu.core_type<tc>, window_params = [{transform_indices = @transform_0, window_bounds = array<i64: 16, 16>}, {pipeline_mode = #tpu.pipeline_mode<synchronous>, transform_indices = @transform_1, window_bounds = array<i64: 16, 256>}, {pipeline_mode = #tpu.pipeline_mode<synchronous>, transform_indices = @transform_2, window_bounds = array<i64: 256, 128>}, {pipeline_mode = #tpu.pipeline_mode<synchronous>, transform_indices = @transform_3, window_bounds = array<i64: 128, 128>}, {pipeline_mode = #tpu.pipeline_mode<synchronous>, transform_indices = @transform_4, window_bounds = array<i64: 128, 4>}, {pipeline_mode = #tpu.pipeline_mode<synchronous>, transform_indices = @transform_5, window_bounds = array<i64: 4, 256>}, {transform_indices = @transform_6, window_bounds = array<i64: 16, 4>}]} {
    %c0 = arith.constant 0 : index
    %c0_0 = arith.constant 0 : index
    %0 = vector.load %arg1[%c0, %c0_0] : memref<16x16xf32, #tpu.memory_space<vmem>>, vector<16x16xf32>
    %1 = arith.truncf %0 : vector<16x16xf32> to vector<16x16xbf16>
    %c0_1 = arith.constant 0 : index
    %c0_2 = arith.constant 0 : index
    %2 = vector.load %arg2[%c0_1, %c0_2] : memref<16x256xbf16, #tpu.memory_space<vmem>>, vector<16x256xbf16>
    %cst = arith.constant dense<0.000000e+00> : vector<16x256xf32>
    %3 = tpu.matmul %1, %2, %cst {dimension_numbers = #tpu.dot_dimension_numbers<[1], [0], [0], [1], [0, 0, 1, 1], [], []>} : vector<16x16xbf16>, vector<16x256xbf16>, vector<16x256xf32> -> vector<16x256xf32>
    %c0_3 = arith.constant 0 : index
    %c0_4 = arith.constant 0 : index
    %4 = vector.load %arg6[%c0_3, %c0_4] : memref<4x256xf32, #tpu.memory_space<vmem>>, vector<1x256xf32>
    %5 = vector.broadcast %4 : vector<1x256xf32> to vector<16x256xf32>
    %6 = arith.addf %3, %5 : vector<16x256xf32>
    %cst_5 = arith.constant 0.000000e+00 : f32
    %7 = vector.broadcast %cst_5 : f32 to vector<16x256xf32>
    %8 = arith.maximumf %6, %7 : vector<16x256xf32>
    %9 = arith.truncf %8 : vector<16x256xf32> to vector<16x256xbf16>
    %c0_6 = arith.constant 0 : index
    %c0_7 = arith.constant 0 : index
    %10 = vector.load %arg3[%c0_6, %c0_7] : memref<256x128xbf16, #tpu.memory_space<vmem>>, vector<256x128xbf16>
    %cst_8 = arith.constant dense<0.000000e+00> : vector<16x128xf32>
    %11 = tpu.matmul %9, %10, %cst_8 {dimension_numbers = #tpu.dot_dimension_numbers<[1], [0], [0], [1], [0, 0, 1, 1], [], []>} : vector<16x256xbf16>, vector<256x128xbf16>, vector<16x128xf32> -> vector<16x128xf32>
    %c1 = arith.constant 1 : index
    %c0_9 = arith.constant 0 : index
    %12 = vector.load %arg6[%c1, %c0_9] : memref<4x256xf32, #tpu.memory_space<vmem>>, vector<1x128xf32>
    %13 = vector.broadcast %12 : vector<1x128xf32> to vector<16x128xf32>
    %14 = arith.addf %11, %13 : vector<16x128xf32>
    %cst_10 = arith.constant 0.000000e+00 : f32
    %15 = vector.broadcast %cst_10 : f32 to vector<16x128xf32>
    %16 = arith.maximumf %14, %15 : vector<16x128xf32>
    %17 = arith.truncf %16 : vector<16x128xf32> to vector<16x128xbf16>
    %c0_11 = arith.constant 0 : index
    %c0_12 = arith.constant 0 : index
    %18 = vector.load %arg4[%c0_11, %c0_12] : memref<128x128xbf16, #tpu.memory_space<vmem>>, vector<128x128xbf16>
    %cst_13 = arith.constant dense<0.000000e+00> : vector<16x128xf32>
    %19 = tpu.matmul %17, %18, %cst_13 {dimension_numbers = #tpu.dot_dimension_numbers<[1], [0], [0], [1], [0, 0, 1, 1], [], []>} : vector<16x128xbf16>, vector<128x128xbf16>, vector<16x128xf32> -> vector<16x128xf32>
    %c2 = arith.constant 2 : index
    %c0_14 = arith.constant 0 : index
    %20 = vector.load %arg6[%c2, %c0_14] : memref<4x256xf32, #tpu.memory_space<vmem>>, vector<1x128xf32>
    %21 = vector.broadcast %20 : vector<1x128xf32> to vector<16x128xf32>
    %22 = arith.addf %19, %21 : vector<16x128xf32>
    %cst_15 = arith.constant 0.000000e+00 : f32
    %23 = vector.broadcast %cst_15 : f32 to vector<16x128xf32>
    %24 = arith.maximumf %22, %23 : vector<16x128xf32>
    %25 = arith.truncf %24 : vector<16x128xf32> to vector<16x128xbf16>
    %c0_16 = arith.constant 0 : index
    %c0_17 = arith.constant 0 : index
    %26 = vector.load %arg5[%c0_16, %c0_17] : memref<128x4xbf16, #tpu.memory_space<vmem>>, vector<128x4xbf16>
    %cst_18 = arith.constant dense<0.000000e+00> : vector<16x4xf32>
    %27 = tpu.matmul %25, %26, %cst_18 {dimension_numbers = #tpu.dot_dimension_numbers<[1], [0], [0], [1], [0, 0, 1, 1], [], []>} : vector<16x128xbf16>, vector<128x4xbf16>, vector<16x4xf32> -> vector<16x4xf32>
    %c3 = arith.constant 3 : index
    %c0_19 = arith.constant 0 : index
    %28 = vector.load %arg6[%c3, %c0_19] : memref<4x256xf32, #tpu.memory_space<vmem>>, vector<1x4xf32>
    %29 = vector.broadcast %28 : vector<1x4xf32> to vector<16x4xf32>
    %30 = arith.addf %27, %29 : vector<16x4xf32>
    %31 = arith.negf %30 : vector<16x4xf32>
    %32 = math.exp %31 : vector<16x4xf32>
    %cst_20 = arith.constant 1.000000e+00 : f32
    %33 = vector.broadcast %cst_20 : f32 to vector<16x4xf32>
    %34 = arith.addf %33, %32 : vector<16x4xf32>
    %35 = arith.divf %33, %34 : vector<16x4xf32>
    %c0_21 = arith.constant 0 : index
    %c0_22 = arith.constant 0 : index
    %36 = vector.load %arg7[%c0_21, %c0_22] : memref<16x4xf32, #tpu.memory_space<vmem>>, vector<16x4xf32>
    tpu.vector_store %arg7[%c0_21, %c0_22], %35 {strides = array<i32>} : memref<16x4xf32, #tpu.memory_space<vmem>>, vector<16x4xf32>,
    return
  }
  func.func @transform_0(%arg0: i32) -> (i32, i32) {
    %c0_i32 = arith.constant 0 : i32
    %c0_i32_0 = arith.constant 0 : i32
    return %arg0, %c0_i32 : i32, i32
  }
  func.func @transform_1(%arg0: i32) -> (i32, i32) {
    %c0_i32 = arith.constant 0 : i32
    %c0_i32_0 = arith.constant 0 : i32
    %c0_i32_1 = arith.constant 0 : i32
    return %c0_i32, %c0_i32_0 : i32, i32
  }
  func.func @transform_2(%arg0: i32) -> (i32, i32) {
    %c0_i32 = arith.constant 0 : i32
    %c0_i32_0 = arith.constant 0 : i32
    %c0_i32_1 = arith.constant 0 : i32
    return %c0_i32, %c0_i32_0 : i32, i32
  }
  func.func @transform_3(%arg0: i32) -> (i32, i32) {
    %c0_i32 = arith.constant 0 : i32
    %c0_i32_0 = arith.constant 0 : i32
    %c0_i32_1 = arith.constant 0 : i32
    return %c0_i32, %c0_i32_0 : i32, i32
  }
  func.func @transform_4(%arg0: i32) -> (i32, i32) {
    %c0_i32 = arith.constant 0 : i32
    %c0_i32_0 = arith.constant 0 : i32
    %c0_i32_1 = arith.constant 0 : i32
    return %c0_i32, %c0_i32_0 : i32, i32
  }
  func.func @transform_5(%arg0: i32) -> (i32, i32) {
    %c0_i32 = arith.constant 0 : i32
    %c0_i32_0 = arith.constant 0 : i32
    %c0_i32_1 = arith.constant 0 : i32
    return %c0_i32, %c0_i32_0 : i32, i32
  }
  func.func @transform_6(%arg0: i32) -> (i32, i32) {
    %c0_i32 = arith.constant 0 : i32
    %c0_i32_0 = arith.constant 0 : i32
    return %arg0, %c0_i32 : i32, i32
  }
}

</mosaic_0001>

<llo_original>
// kernel: actor_forward.1
$region0: #{actor_forward.1}
  #allocation0 [shape = 'u32[]', space=smem, size = 0x4, offset = 0x4, fixed_abs, tag = 'smem constant byte address 0x4 - core index']
  #allocation1 [shape = 'u32[72,128]{1,0:T(1,128)}', space=vmem, size = 0x9000, scoped, tag = 'internal scratch']
  %s0 = inlined_call_operand.vmem [shape: f32[2,16], index: 0, kind: input, shape index: {}]
  %s1 = inlined_call_operand.hbm [shape: bf16[16,256], index: 1, kind: input, shape index: {}]
  %s2 = inlined_call_operand.hbm [shape: bf16[256,128], index: 2, kind: input, shape index: {}]
  %s3 = inlined_call_operand.vmem [shape: bf16[128,128], index: 3, kind: input, shape index: {}]
  %s4 = inlined_call_operand.vmem [shape: bf16[128,4], index: 4, kind: input, shape index: {}]
  %s5 = inlined_call_operand.hbm [shape: f32[4,256], index: 5, kind: input, shape index: {}]
  %s6 = inlined_call_operand.hbm [shape: f32[2,4], index: 6, kind: output, shape index: {}]
  %s7 = sld [smem:[#allocation0]]
  $region46: #{actor_forward.1} parent=0
    _
  %s9 = ssub.s32 1, %s7
  %s10 = scalar_select 0, %s9, %s7
  $region1: #{actor_forward.1} parent=0
    #allocation2 [shape = 'u8[8192]{0}', space=vmem, size = 0x2000, scoped, tag = 'input window, operand 1, single buffered']
    #allocation3 [shape = 's32[1]{0}', space=sflag, size = 0x4, scoped, tag = 'scoped memory for actor_forward.1']
    #allocation4 [shape = 's32[1]{0}', space=sflag, size = 0x4, scoped, tag = 'scoped memory for actor_forward.1']
    #allocation5 [shape = 'u8[65536]{0}', space=vmem, size = 0x10000, scoped, tag = 'input window, operand 2, single buffered']
    #allocation6 [shape = 's32[1]{0}', space=sflag, size = 0x4, scoped, tag = 'scoped memory for actor_forward.1']
    #allocation7 [shape = 'u8[4096]{0}', space=vmem, size = 0x1000, scoped, tag = 'input window, operand 5, single buffered']
    #allocation8 [shape = 'u8[8192]{0}', space=vmem, size = 0x2000, scoped, tag = 'output window, operand 0, single buffered']
    %11 = vsyncpa [#allocation3], 0
    %12 = vsyncpa [#allocation6], 0
    %13 = vsyncpa [#allocation4], 0
    // Predicated region
    $region2: #{actor_forward.1} parent=1 // pred_check
      _
    $region3: #{actor_forward.1} parent=1 // pred_check_branch
      %15 = sbr.rel (0) target = $region5
    $region4: #{actor_forward.1} parent=1 // pred_region
      _
    $region5: #{actor_forward.1} parent=1 // pred_fallthru
      _
    // Predicated region
    $region6: #{actor_forward.1} parent=1 // pred_check
      _
    $region7: #{actor_forward.1} parent=1 // pred_check_branch
      %17 = sbr.rel (0) target = $region9
    $region8: #{actor_forward.1} parent=1 // pred_region
      %19 = vsyncadd [#allocation3], 0
      %s20 = sshll.u32 %s1, 4
      %s21 = int_to_ptr.hbm [resolvable:$true] %s20
      %s22 = sshll.u32 [#allocation2], 4
      %s23 = int_to_ptr.vmem [resolvable:$true] %s22
      %28 = dma.hbm_to_vmem [thread:$0]  %s21, 256, %s23, [#allocation3], 128, 128, 8
    $region9: #{actor_forward.1} parent=1 // pred_fallthru
      _
    // Predicated region
    $region10: #{actor_forward.1} parent=1 // pred_check
      _
    $region11: #{actor_forward.1} parent=1 // pred_check_branch
      %30 = sbr.rel (0) target = $region13
    $region12: #{actor_forward.1} parent=1 // pred_region
      %32 = vsyncadd [#allocation6], 0
      %s33 = sshll.u32 %s2, 4
      %s34 = int_to_ptr.hbm [resolvable:$true] %s33
      %s35 = sshll.u32 [#allocation5], 4
      %s36 = int_to_ptr.vmem [resolvable:$true] %s35
      %41 = dma.hbm_to_vmem [thread:$0]  %s34, 2048, %s36, [#allocation6], 64, 64, 4
    $region13: #{actor_forward.1} parent=1 // pred_fallthru
      _
    // Predicated region
    $region14: #{actor_forward.1} parent=1 // pred_check
      _
    $region15: #{actor_forward.1} parent=1 // pred_check_branch
      %43 = sbr.rel (0) target = $region17
    $region16: #{actor_forward.1} parent=1 // pred_region
      _
    $region17: #{actor_forward.1} parent=1 // pred_fallthru
      _
    // Predicated region
    $region18: #{actor_forward.1} parent=1 // pred_check
      _
    $region19: #{actor_forward.1} parent=1 // pred_check_branch
      %45 = sbr.rel (0) target = $region21
    $region20: #{actor_forward.1} parent=1 // pred_region
      _
    $region21: #{actor_forward.1} parent=1 // pred_fallthru
      _
    // Predicated region
    $region22: #{actor_forward.1} parent=1 // pred_check
      _
    $region23: #{actor_forward.1} parent=1 // pred_check_branch
      %47 = sbr.rel (0) target = $region25
    $region24: #{actor_forward.1} parent=1 // pred_region
      %49 = vsyncadd [#allocation6], 0
      %s51 = sshll.u32 %s5, 4
      %s52 = int_to_ptr.hbm [resolvable:$true] %s51
      %s53 = sshll.u32 [#allocation7], 4
      %s54 = int_to_ptr.vmem [resolvable:$true] %s53
      %56 = dma.hbm_to_vmem [thread:$0]  %s52, 128, %s54, [#allocation6]
    $region25: #{actor_forward.1} parent=1 // pred_fallthru
      _
    // Predicated region
    $region26: #{actor_forward.1} parent=1 // pred_check
      _
    $region27: #{actor_forward.1} parent=1 // pred_check_branch
      %58 = sbr.rel (0) target = $region29
    $region28: #{actor_forward.1} parent=1 // pred_region
      %60 = dma.done [#allocation3], 256
    $region29: #{actor_forward.1} parent=1 // pred_fallthru
      _
    // Predicated region
    $region30: #{actor_forward.1} parent=1 // pred_check
      _
    $region31: #{actor_forward.1} parent=1 // pred_check_branch
      %62 = sbr.rel (0) target = $region33
    $region32: #{actor_forward.1} parent=1 // pred_region
      %64 = dma.done [#allocation6], 2048
    $region33: #{actor_forward.1} parent=1 // pred_fallthru
      _
    // Predicated region
    $region34: #{actor_forward.1} parent=1 // pred_check
      _
    $region35: #{actor_forward.1} parent=1 // pred_check_branch
      %66 = sbr.rel (0) target = $region37
    $region36: #{actor_forward.1} parent=1 // pred_region
      %68 = dma.done [#allocation6], 128
    $region37: #{actor_forward.1} parent=1 // pred_fallthru
      _
    %v70 = vld [vmem:[%s0] sm:$0xff]
    %v71 = vld [vmem:[%s0 + $0x8] sm:$0xff]
    %v72 = vpack.c.bf16 %v71, %v70
    %v73 = vld [vmem:[#allocation2] sm:$0xff]
    %v74 = vld [vmem:[#allocation2 + $0x8] sm:$0xff]
    %v75 = vld [vmem:[#allocation7] ss:$4 sm:$0x3]
    %v77 = vperm.slane %v75, 0
    %v78 = vperm.slane %v75, 1
    %v83 = vunpack.c.l.b16 %v73
    %v84 = vunpack.c.h.b16 %v73
    %v85 = vunpack.c.l.b16 %v74
    %v86 = vunpack.c.h.b16 %v74
    %v87 = vpack.c.b16 %v85, %v83
    %v88 = vpack.c.b16 %v86, %v84
    %vm91 = vcmask 130048
    %v93 = vsel %vm91, %v72, 0
    %95 = vmatpush.bf16.msra.mxu0 0
    %96 = vmatpush.bf16.msra.mxu0 0
    %97 = vmatpush.bf16.msra.mxu0 0
    %98 = vmatpush.bf16.msra.mxu0 0
    %99 = vmatpush.bf16.msra.mxu0 0
    %100 = vmatpush.bf16.msra.mxu0 0
    %101 = vmatpush.bf16.msra.mxu0 0
    %102 = vmatpush.bf16.msra.mxu0 %v87
    %103 = vmatmul.bf16.gmra.mxu0 %v93
    %v104 = vpop.f32.mrf.mxu0
    %v105 = vadd.f32 %v77, %v104
    %v106 = vpop.f32.mrf.mxu0
    %v107 = vadd.f32 %v77, %v106
    %108 = vdwg.mxu0
    %109 = vmatpush.bf16.msra.mxu0 0
    %110 = vmatpush.bf16.msra.mxu0 0
    %111 = vmatpush.bf16.msra.mxu0 0
    %112 = vmatpush.bf16.msra.mxu0 0
    %113 = vmatpush.bf16.msra.mxu0 0
    %114 = vmatpush.bf16.msra.mxu0 0
    %115 = vmatpush.bf16.msra.mxu0 0
    %116 = vmatpush.bf16.msra.mxu0 %v88
    %117 = vmatmul.bf16.gmra.mxu0 %v93
    %v118 = vpop.f32.mrf.mxu0
    %v119 = vadd.f32 %v78, %v118
    %v120 = vpop.f32.mrf.mxu0
    %v121 = vadd.f32 %v78, %v120
    %122 = vdwg.mxu0
    %v123 = vmax.f32 %v105, 0.0
    %v124 = vmax.f32 %v119, 0.0
    %v125 = vmax.f32 %v107, 0.0
    %v126 = vmax.f32 %v121, 0.0
    %v127 = vpack.c.bf16 %v125, %v123
    %v128 = vpack.c.bf16 %v126, %v124
    %v129 = vld [vmem:[#allocation5] sm:$0xf]
    %v130 = vld [vmem:[#allocation5 + $0x4] sm:$0xf]
    %v131 = vld [vmem:[#allocation5 + $0x8] sm:$0xf]
    %v132 = vld [vmem:[#allocation5 + $0xc] sm:$0xf]
    %v133 = vld [vmem:[#allocation5 + $0x10] sm:$0xf]
    %v134 = vld [vmem:[#allocation5 + $0x14] sm:$0xf]
    %v135 = vld [vmem:[#allocation5 + $0x18] sm:$0xf]
    %v136 = vld [vmem:[#allocation5 + $0x1c] sm:$0xf]
    %v137 = vld [vmem:[#allocation5 + $0x20] sm:$0xf]
    %v138 = vld [vmem:[#allocation5 + $0x24] sm:$0xf]
    %v139 = vld [vmem:[#allocation5 + $0x28] sm:$0xf]
    %v140 = vld [vmem:[#allocation5 + $0x2c] sm:$0xf]
    %v141 = vld [vmem:[#allocation5 + $0x30] sm:$0xf]
    %v142 = vld [vmem:[#allocation5 + $0x34] sm:$0xf]
    %v143 = vld [vmem:[#allocation5 + $0x38] sm:$0xf]
    %v144 = vld [vmem:[#allocation5 + $0x3c] sm:$0xf]
    %v145 = vld [vmem:[#allocation5 + $0x40] sm:$0xf]
    %v146 = vld [vmem:[#allocation5 + $0x44] sm:$0xf]
    %v147 = vld [vmem:[#allocation5 + $0x48] sm:$0xf]
    %v148 = vld [vmem:[#allocation5 + $0x4c] sm:$0xf]
    %v149 = vld [vmem:[#allocation5 + $0x50] sm:$0xf]
    %v150 = vld [vmem:[#allocation5 + $0x54] sm:$0xf]
    %v151 = vld [vmem:[#allocation5 + $0x58] sm:$0xf]
    %v152 = vld [vmem:[#allocation5 + $0x5c] sm:$0xf]
    %v153 = vld [vmem:[#allocation5 + $0x60] sm:$0xf]
    %v154 = vld [vmem:[#allocation5 + $0x64] sm:$0xf]
    %v155 = vld [vmem:[#allocation5 + $0x68] sm:$0xf]
    %v156 = vld [vmem:[#allocation5 + $0x6c] sm:$0xf]
    %v157 = vld [vmem:[#allocation5 + $0x70] sm:$0xf]
    %v158 = vld [vmem:[#allocation5 + $0x74] sm:$0xf]
    %v159 = vld [vmem:[#allocation5 + $0x78] sm:$0xf]
    %v160 = vld [vmem:[#allocation5 + $0x7c] sm:$0xf]
    %v161 = vld [vmem:[#allocation7 + $0x1] sm:$0x1]
    %v162 = vperm.slane %v161, 0
    %v195 = vunpack.c.l.b16 %v129
    %v196 = vunpack.c.l.b16 %v130
    %v197 = vunpack.c.l.b16 %v131
    %v198 = vunpack.c.l.b16 %v132
    %v199 = vunpack.c.l.b16 %v133
    %v200 = vunpack.c.l.b16 %v134
    %v201 = vunpack.c.l.b16 %v135
    %v202 = vunpack.c.l.b16 %v136
    %v203 = vunpack.c.l.b16 %v137
    %v204 = vunpack.c.l.b16 %v138
    %v205 = vunpack.c.l.b16 %v139
    %v206 = vunpack.c.l.b16 %v140
    %v207 = vunpack.c.l.b16 %v141
    %v208 = vunpack.c.l.b16 %v142
    %v209 = vunpack.c.l.b16 %v143
    %v210 = vunpack.c.l.b16 %v144
    %v211 = vunpack.c.l.b16 %v145
    %v212 = vunpack.c.l.b16 %v146
    %v213 = vunpack.c.l.b16 %v147
    %v214 = vunpack.c.l.b16 %v148
    %v215 = vunpack.c.l.b16 %v149
    %v216 = vunpack.c.l.b16 %v150
    %v217 = vunpack.c.l.b16 %v151
    %v218 = vunpack.c.l.b16 %v152
    %v219 = vunpack.c.l.b16 %v153
    %v220 = vunpack.c.l.b16 %v154
    %v221 = vunpack.c.l.b16 %v155
    %v222 = vunpack.c.l.b16 %v156
    %v223 = vunpack.c.l.b16 %v157
    %v224 = vunpack.c.l.b16 %v158
    %v225 = vunpack.c.l.b16 %v159
    %v226 = vunpack.c.l.b16 %v160
    %v227 = vpack.c.b16 %v196, %v195
    %v228 = vpack.c.b16 %v198, %v197
    %v229 = vpack.c.b16 %v200, %v199
    %v230 = vpack.c.b16 %v202, %v201
    %v231 = vpack.c.b16 %v204, %v203
    %v232 = vpack.c.b16 %v206, %v205
    %v233 = vpack.c.b16 %v208, %v207
    %v234 = vpack.c.b16 %v210, %v209
    %v235 = vpack.c.b16 %v212, %v211
    %v236 = vpack.c.b16 %v214, %v213
    %v237 = vpack.c.b16 %v216, %v215
    %v238 = vpack.c.b16 %v218, %v217
    %v239 = vpack.c.b16 %v220, %v219
    %v240 = vpack.c.b16 %v222, %v221
    %v241 = vpack.c.b16 %v224, %v223
    %v242 = vpack.c.b16 %v226, %v225
    %259 = vmatpush.bf16.msra.mxu0 %v234
    %260 = vmatpush.bf16.msra.mxu0 %v233
    %261 = vmatpush.bf16.msra.mxu0 %v232
    %262 = vmatpush.bf16.msra.mxu0 %v231
    %263 = vmatpush.bf16.msra.mxu0 %v230
    %264 = vmatpush.bf16.msra.mxu0 %v229
    %265 = vmatpush.bf16.msra.mxu0 %v228
    %266 = vmatpush.bf16.msra.mxu0 %v227
    %267 = vmatmul.bf16.gmra.mxu0 %v127
    %v268 = vpop.f32.mrf.mxu0
    %v269 = vadd.f32 %v162, %v268
    %v270 = vpop.f32.mrf.mxu0
    %v271 = vadd.f32 %v162, %v270
    %272 = vdwg.mxu0
    %273 = vmatpush.bf16.msra.mxu0 %v242
    %274 = vmatpush.bf16.msra.mxu0 %v241
    %275 = vmatpush.bf16.msra.mxu0 %v240
    %276 = vmatpush.bf16.msra.mxu0 %v239
    %277 = vmatpush.bf16.msra.mxu0 %v238
    %278 = vmatpush.bf16.msra.mxu0 %v237
    %279 = vmatpush.bf16.msra.mxu0 %v236
    %280 = vmatpush.bf16.msra.mxu0 %v235
    %281 = vmatmul.bf16.gmra.mxu0 %v128
    %v282 = vpop.f32.mrf.mxu0
    %v283 = vadd.f32 %v269, %v282
    %v284 = vpop.f32.mrf.mxu0
    %v285 = vadd.f32 %v271, %v284
    %286 = vdwg.mxu0
    %v287 = vmax.f32 %v283, 0.0
    %v288 = vmax.f32 %v285, 0.0
    %v289 = vpack.c.bf16 %v288, %v287
    %v290 = vld [vmem:[%s3] sm:$0xf]
    %v291 = vld [vmem:[%s3 + $0x4] sm:$0xf]
    %v292 = vld [vmem:[%s3 + $0x8] sm:$0xf]
    %v293 = vld [vmem:[%s3 + $0xc] sm:$0xf]
    %v294 = vld [vmem:[%s3 + $0x10] sm:$0xf]
    %v295 = vld [vmem:[%s3 + $0x14] sm:$0xf]
    %v296 = vld [vmem:[%s3 + $0x18] sm:$0xf]
    %v297 = vld [vmem:[%s3 + $0x1c] sm:$0xf]
    %v298 = vld [vmem:[%s3 + $0x20] sm:$0xf]
    %v299 = vld [vmem:[%s3 + $0x24] sm:$0xf]
    %v300 = vld [vmem:[%s3 + $0x28] sm:$0xf]
    %v301 = vld [vmem:[%s3 + $0x2c] sm:$0xf]
    %v302 = vld [vmem:[%s3 + $0x30] sm:$0xf]
    %v303 = vld [vmem:[%s3 + $0x34] sm:$0xf]
    %v304 = vld [vmem:[%s3 + $0x38] sm:$0xf]
    %v305 = vld [vmem:[%s3 + $0x3c] sm:$0xf]
    %v306 = vld [vmem:[#allocation7 + $0x2] sm:$0x1]
    %v307 = vperm.slane %v306, 0
    %v324 = vunpack.c.l.b16 %v290
    %v325 = vunpack.c.l.b16 %v291
    %v326 = vunpack.c.l.b16 %v292
    %v327 = vunpack.c.l.b16 %v293
    %v328 = vunpack.c.l.b16 %v294
    %v329 = vunpack.c.l.b16 %v295
    %v330 = vunpack.c.l.b16 %v296
    %v331 = vunpack.c.l.b16 %v297
    %v332 = vunpack.c.l.b16 %v298
    %v333 = vunpack.c.l.b16 %v299
    %v334 = vunpack.c.l.b16 %v300
    %v335 = vunpack.c.l.b16 %v301
    %v336 = vunpack.c.l.b16 %v302
    %v337 = vunpack.c.l.b16 %v303
    %v338 = vunpack.c.l.b16 %v304
    %v339 = vunpack.c.l.b16 %v305
    %v340 = vpack.c.b16 %v325, %v324
    %v341 = vpack.c.b16 %v327, %v326
    %v342 = vpack.c.b16 %v329, %v328
    %v343 = vpack.c.b16 %v331, %v330
    %v344 = vpack.c.b16 %v333, %v332
    %v345 = vpack.c.b16 %v335, %v334
    %v346 = vpack.c.b16 %v337, %v336
    %v347 = vpack.c.b16 %v339, %v338
    %356 = vmatpush.bf16.msra.mxu0 %v347
    %357 = vmatpush.bf16.msra.mxu0 %v346
    %358 = vmatpush.bf16.msra.mxu0 %v345
    %359 = vmatpush.bf16.msra.mxu0 %v344
    %360 = vmatpush.bf16.msra.mxu0 %v343
    %361 = vmatpush.bf16.msra.mxu0 %v342
    %362 = vmatpush.bf16.msra.mxu0 %v341
    %363 = vmatpush.bf16.msra.mxu0 %v340
    %364 = vmatmul.bf16.gmra.mxu0 %v289
    %v365 = vpop.f32.mrf.mxu0
    %v366 = vadd.f32 %v307, %v365
    %v367 = vpop.f32.mrf.mxu0
    %v368 = vadd.f32 %v307, %v367
    %369 = vdwg.mxu0
    %v370 = vmax.f32 %v366, 0.0
    %v371 = vmax.f32 %v368, 0.0
    %v372 = vpack.c.bf16 %v371, %v370
    %v373 = vld [vmem:[%s4] sm:$0xf]
    %v374 = vld [vmem:[%s4 + $0x4] sm:$0xf]
    %v375 = vld [vmem:[%s4 + $0x8] sm:$0xf]
    %v376 = vld [vmem:[%s4 + $0xc] sm:$0xf]
    %v377 = vld [vmem:[%s4 + $0x10] sm:$0xf]
    %v378 = vld [vmem:[%s4 + $0x14] sm:$0xf]
    %v379 = vld [vmem:[%s4 + $0x18] sm:$0xf]
    %v380 = vld [vmem:[%s4 + $0x1c] sm:$0xf]
    %v381 = vld [vmem:[%s4 + $0x20] sm:$0xf]
    %v382 = vld [vmem:[%s4 + $0x24] sm:$0xf]
    %v383 = vld [vmem:[%s4 + $0x28] sm:$0xf]
    %v384 = vld [vmem:[%s4 + $0x2c] sm:$0xf]
    %v385 = vld [vmem:[%s4 + $0x30] sm:$0xf]
    %v386 = vld [vmem:[%s4 + $0x34] sm:$0xf]
    %v387 = vld [vmem:[%s4 + $0x38] sm:$0xf]
    %v388 = vld [vmem:[%s4 + $0x3c] sm:$0xf]
    %v389 = vld [vmem:[#allocation7 + $0x3] sm:$0x1]
    %v390 = vperm.slane %v389, 0
    %v407 = vunpack.c.l.b16 %v373
    %v408 = vunpack.c.l.b16 %v374
    %v409 = vunpack.c.l.b16 %v375
    %v410 = vunpack.c.l.b16 %v376
    %v411 = vunpack.c.l.b16 %v377
    %v412 = vunpack.c.l.b16 %v378
    %v413 = vunpack.c.l.b16 %v379
    %v414 = vunpack.c.l.b16 %v380
    %v415 = vunpack.c.l.b16 %v381
    %v416 = vunpack.c.l.b16 %v382
    %v417 = vunpack.c.l.b16 %v383
    %v418 = vunpack.c.l.b16 %v384
    %v419 = vunpack.c.l.b16 %v385
    %v420 = vunpack.c.l.b16 %v386
    %v421 = vunpack.c.l.b16 %v387
    %v422 = vunpack.c.l.b16 %v388
    %v423 = vpack.c.b16 %v408, %v407
    %v424 = vpack.c.b16 %v410, %v409
    %v425 = vpack.c.b16 %v412, %v411
    %v426 = vpack.c.b16 %v414, %v413
    %v427 = vpack.c.b16 %v416, %v415
    %v428 = vpack.c.b16 %v418, %v417
    %v429 = vpack.c.b16 %v420, %v419
    %v430 = vpack.c.b16 %v422, %v421
    %439 = vmatpush.bf16.msra.mxu0 %v430
    %440 = vmatpush.bf16.msra.mxu0 %v429
    %441 = vmatpush.bf16.msra.mxu0 %v428
    %442 = vmatpush.bf16.msra.mxu0 %v427
    %443 = vmatpush.bf16.msra.mxu0 %v426
    %444 = vmatpush.bf16.msra.mxu0 %v425
    %445 = vmatpush.bf16.msra.mxu0 %v424
    %446 = vmatpush.bf16.msra.mxu0 %v423
    %447 = vmatmul.bf16.gmra.mxu0 %v372
    %v448 = vpop.f32.mrf.mxu0
    %v449 = vadd.f32 %v390, %v448
    %v450 = vpop.f32.mrf.mxu0
    %v451 = vadd.f32 %v390, %v450
    %452 = vdwg.mxu0
    %v453 = vxor.u32 %v449, 2147483648
    %v454 = vxor.u32 %v451, 2147483648
    %v455 = vmul.f32 %v453, 1.442695
    %v456 = vpow.pop %v455
    %v457 = vmul.f32 %v454, 1.442695
    %v458 = vpow.pop %v457
    %v459 = vadd.f32 %v456, 1.0
    %v460 = vadd.f32 %v458, 1.0
    %v461 = vrcp.pop %v459
    %v462 = vmul.f32 %v459, %v461
    %v463 = vsub.f32 1.0, %v462
    %v464 = vmul.f32 %v461, %v463
    %v465 = vadd.f32 %v461, %v464
    %vm466 = vweird.f32 %v459
    %vm467 = vweird.f32 %v461
    %vm468 = vmor %vm466, %vm467
    %v469 = vsel %vm468, %v461, %v465
    %v470 = vand.u32 2147483647, %v459
    %vm471 = vcmp.eq.f32.partialorder %v470, 8.507059e+37
    %v472 = vand.u32 %v459, 2147483648
    %v473 = vor.u32 1.1754944e-38, %v472
    %v474 = vsel %vm471, %v473, %v469
    %v475 = vmul.f32 1.0, %v474
    %v476 = vrcp.pop %v460
    %v477 = vmul.f32 %v460, %v476
    %v478 = vsub.f32 1.0, %v477
    %v479 = vmul.f32 %v476, %v478
    %v480 = vadd.f32 %v476, %v479
    %vm481 = vweird.f32 %v460
    %vm482 = vweird.f32 %v476
    %vm483 = vmor %vm481, %vm482
    %v484 = vsel %vm483, %v476, %v480
    %v485 = vand.u32 2147483647, %v460
    %vm486 = vcmp.eq.f32.partialorder %v485, 8.507059e+37
    %v487 = vand.u32 %v460, 2147483648
    %v488 = vor.u32 1.1754944e-38, %v487
    %v489 = vsel %vm486, %v488, %v484
    %v490 = vmul.f32 1.0, %v489
    %vm491 = vcmask 31744
    %492 = vst.msk [vmem:[#allocation8] sm:$0xff] %vm491, %v475
    %493 = vst.msk [vmem:[#allocation8 + $0x8] sm:$0xff] %vm491, %v490
    // Predicated region
    $region38: #{actor_forward.1} parent=1 // pred_check
      _
    $region39: #{actor_forward.1} parent=1 // pred_check_branch
      %495 = sbr.rel (0) target = $region41
    $region40: #{actor_forward.1} parent=1 // pred_region
      %497 = vsyncadd [#allocation4], 224
      %s498 = sshll.u32 [#allocation8], 4
      %s499 = int_to_ptr.vmem [resolvable:$true] %s498
      %s500 = sshll.u32 %s6, 4
      %s501 = int_to_ptr.hbm [resolvable:$true] %s500
      %506 = dma.vmem_to_hbm [thread:$0]  %s499, 32, %s501, [#allocation4], 32, 32, 2
    $region41: #{actor_forward.1} parent=1 // pred_fallthru
      _
    // Predicated region
    $region42: #{actor_forward.1} parent=1 // pred_check
      _
    $region43: #{actor_forward.1} parent=1 // pred_check_branch
      %508 = sbr.rel (0) target = $region45
    $region44: #{actor_forward.1} parent=1 // pred_region
      %510 = dma.done [#allocation4], 256
    $region45: #{actor_forward.1} parent=1 // pred_fallthru
      _
    %511 = vsyncpa [#allocation3], 1
    %512 = vsyncpa [#allocation6], 1
    %513 = vsyncpa [#allocation4], 1

</llo_original>
